<compile_context>
chip_gen: v7x
topology: tpu7x:2x2x1
jax: 0.10.0
libtpu: 0.0.40
codegen_flags: <defaults>
</compile_context>

<pallas_src>
import jax
import jax.numpy as jnp
import numpy as np
from jax.experimental import pallas as pl
from jax.experimental.pallas import tpu as pltpu


# ----------------------------- static slab layout -------------------------------

def _align8(n):
    return (n + 7) // 8 * 8


def make_layout(nets_layers):
    """Row layout of the packed parameter slab for the fused block-diagonal MLP.

    nets_layers: list of per-net layer width lists (same depth), e.g.
                 [[48,12,24,12,4], [16,12,24,12,4], [3,12,24,12,4]].
    """
    depth = len(nets_layers[0]) - 1
    # per-net output widths per layer, fused widths, and 8-padded fused widths
    outs = [[net[li + 1] for net in nets_layers] for li in range(depth)]
    fused_out = [sum(o) for o in outs]
    padded_out = [(_align8(w) if li < depth - 1 else w)
                  for li, w in enumerate(fused_out)]
    # column offset of each net's output block within fused layer li
    col_off = [[int(v) for v in np.cumsum([0] + o[:-1])] for o in outs]

    r = 0
    # layer 0: one weight block per input (so the kernel never needs a concat)
    layer0_w_offs = []
    for net in nets_layers:
        layer0_w_offs.append(r)
        r = _align8(r + net[0])
    b0_off = r
    r = _align8(r + 1)

    # layers 1..depth-1: single fused block-diagonal weight + bias row
    hidden = []
    for li in range(1, depth):
        w_off = r
        r = _align8(r + padded_out[li - 1])
        b_off = r
        r = _align8(r + 1)
        hidden.append((w_off, b_off, padded_out[li - 1], padded_out[li]))

    slab_cols = max(padded_out)
    layout = dict(
        depth=depth,
        layer0_w_offs=layer0_w_offs,
        layer0_dins=[net[0] for net in nets_layers],
        b0_off=b0_off,
        hidden=hidden,
        padded_out=padded_out,
        col_off=col_off,
        outs=outs,
    )
    return layout, r, slab_cols


def pack_params(per_net_params, layout, total_rows, slab_cols):
    """Pack the 3 MLPs' params into one f32 slab as a fused block-diagonal MLP.

    per_net_params: [branch1, branch2, trunk]; each is [W0, b0, W1, b1, ...]
    with W stored [in, out], b stored [1, out].
    """
    slab = np.zeros((total_rows, slab_cols), np.float32)
    depth = layout["depth"]

    # layer 0 (split per-input weight blocks)
    for n, net in enumerate(per_net_params):
        W = np.asarray(net[0], np.float32)
        b = np.asarray(net[1], np.float32)
        off = layout["layer0_w_offs"][n]
        c = layout["col_off"][0][n]
        slab[off:off + W.shape[0], c:c + W.shape[1]] = W
        slab[layout["b0_off"], c:c + b.shape[1]] = b[0]

    # layers 1..depth-1 (block-diagonal)
    for li in range(1, depth):
        w_off, b_off, _, _ = layout["hidden"][li - 1]
        for n, net in enumerate(per_net_params):
            W = np.asarray(net[2 * li], np.float32)
            b = np.asarray(net[2 * li + 1], np.float32)
            r0 = layout["col_off"][li - 1][n]   # rows line up with prev layer's cols
            c0 = layout["col_off"][li][n]
            slab[w_off + r0: w_off + r0 + W.shape[0], c0:c0 + W.shape[1]] = W
            slab[b_off, c0:c0 + b.shape[1]] = b[0]
    return jnp.asarray(slab)


# ----------------------------- kernel --------------------------------------------

def make_kernel(layout, out_dim):
    l0_offs = layout["layer0_w_offs"]
    l0_dins = layout["layer0_dins"]
    b0_off = layout["b0_off"]
    d0_out = layout["padded_out"][0]
    hidden = layout["hidden"]
    out_col = layout["col_off"][-1]   # e.g. [0, 4, 8]

    def kernel(x1_ref, x2_ref, sc_ref, p_ref, out_ref):
        # ---- fused layer 0, split across the three inputs (no concat needed) ----
        w1 = p_ref[l0_offs[0]:l0_offs[0] + l0_dins[0], 0:d0_out]
        w2 = p_ref[l0_offs[1]:l0_offs[1] + l0_dins[1], 0:d0_out]
        wt = p_ref[l0_offs[2]:l0_offs[2] + l0_dins[2], 0:d0_out]
        b0 = p_ref[b0_off:b0_off + 1, 0:d0_out]
        h = (jnp.dot(x1_ref[...], w1, preferred_element_type=jnp.float32)
             + jnp.dot(x2_ref[...], w2, preferred_element_type=jnp.float32)
             + jnp.dot(sc_ref[...], wt, preferred_element_type=jnp.float32)
             + b0)
        h = jnp.maximum(h, 0.0)

        # ---- fused hidden / output layers (all 8-aligned contraction dims) ----
        for li, (w_off, b_off, din, dout) in enumerate(hidden):
            w = p_ref[w_off:w_off + din, 0:dout]
            b = p_ref[b_off:b_off + 1, 0:dout]
            h = jnp.dot(h, w, preferred_element_type=jnp.float32) + b
            if li < len(hidden) - 1:
                h = jnp.maximum(h, 0.0)   # ReLU on hidden layers only

        # ---- combine: (branch1 + branch2) * trunk ----
        b1 = h[:, out_col[0]:out_col[0] + out_dim]
        b2 = h[:, out_col[1]:out_col[1] + out_dim]
        tr = h[:, out_col[2]:out_col[2] + out_dim]
        out_ref[...] = ((b1 + b2) * tr).astype(out_ref.dtype)

    return kernel


# ----------------------------- wrapper --------------------------------------------

def build_deeponet_forward(layout, total_rows, slab_cols, out_dim, max_block=512):
    kernel = make_kernel(layout, out_dim)

    # static FLOP count per batch row (for the cost estimate)
    flops_per_row = 2 * sum(din * layout["padded_out"][0]
                            for din in layout["layer0_dins"])
    flops_per_row += 2 * sum(din * dout for (_, _, din, dout) in layout["hidden"])

    @jax.jit
    def forward(input_data1, input_data2, spatial_coords, param_slab):
        B = input_data1.shape[0]
        # Elementwise combine requires one trunk row per batch element.
        assert spatial_coords.shape[0] == B, (
            "spatial_coords must have one row per batch element")
        x1 = input_data1.astype(jnp.float32)
        x2 = input_data2.astype(jnp.float32)
        sc = spatial_coords.astype(jnp.float32)
        d1, d2, dt = x1.shape[1], x2.shape[1], sc.shape[1]

        # Batch-block grid: params stay VMEM-resident (constant index_map);
        # "parallel" lets v7x shard grid steps across its 2 TensorCores.
        bB = B if B <= max_block else max_block
        pad = (-B) % bB
        if pad:
            x1 = jnp.pad(x1, ((0, pad), (0, 0)))
            x2 = jnp.pad(x2, ((0, pad), (0, 0)))
            sc = jnp.pad(sc, ((0, pad), (0, 0)))
        Bp = B + pad
        grid = (Bp // bB,)

        flops = flops_per_row * Bp
        bytes_accessed = 4 * (x1.size + x2.size + sc.size
                              + param_slab.size + Bp * out_dim)

        out = pl.pallas_call(
            kernel,
            out_shape=jax.ShapeDtypeStruct((Bp, out_dim), jnp.float32),
            grid_spec=pltpu.PrefetchScalarGridSpec(
                num_scalar_prefetch=0,
                grid=grid,
                in_specs=[
                    pl.BlockSpec((bB, d1), lambda i: (i, 0)),
                    pl.BlockSpec((bB, d2), lambda i: (i, 0)),
                    pl.BlockSpec((bB, dt), lambda i: (i, 0)),
                    # weight slab: same block every step -> DMA'd once, stays resident
                    pl.BlockSpec((total_rows, slab_cols), lambda i: (0, 0)),
                ],
                out_specs=pl.BlockSpec((bB, out_dim), lambda i: (i, 0)),
            ),
            compiler_params=pltpu.CompilerParams(
                dimension_semantics=("parallel",)),
            cost_estimate=pl.CostEstimate(
                flops=flops, transcendentals=0, bytes_accessed=bytes_accessed),
        )(x1, x2, sc, param_slab)
        return out[:B] if pad else out

    return forward


# ----------------------------- param init / reference -----------------------------

def init_mlp_params(key, layers):
    """PyTorch-Linear-style uniform init. Returns [W0, b0, W1, b1, ...]."""
    params = []
    for i in range(len(layers) - 1):
        key, kw, kb = jax.random.split(key, 3)
        bound = 1.0 / np.sqrt(layers[i])
        w = jax.random.uniform(kw, (layers[i], layers[i + 1]),
                               minval=-bound, maxval=bound, dtype=jnp.float32)
        b = jax.random.uniform(kb, (1, layers[i + 1]),
                               minval=-bound, maxval=bound, dtype=jnp.float32)
        params += [w, b]
    return params, key


def reference_forward(x1, x2, sc, p1, p2, pt):
    """Pure-JAX reference matching the PyTorch module (unfused)."""
    def mlp(x, ps):
        n = len(ps) // 2
        for i in range(n):
            x = x @ ps[2 * i] + ps[2 * i + 1]
            if i < n - 1:
                x = jnp.maximum(x, 0.0)
        return x
    return (mlp(x1, p1) + mlp(x2, p2)) * mlp(sc, pt)


# ----------------------------- main ------------------------------------------------

if __name__ == "__main__":
    npoints = 16
    batch = npoints  # combined_branch_output [B,4] * trunk_output [N,4] requires B == N

    branch_layers1 = [npoints * 3, 12, 24, 12, 4]
    branch_layers2 = [npoints, 12, 24, 12, 4]
    trunk_layers = [3, 12, 24, 12, 4]
    out_dim = branch_layers1[-1]

    layout, total_rows, slab_cols = make_layout(
        [branch_layers1, branch_layers2, trunk_layers])

    key = jax.random.PRNGKey(0)
    p1, key = init_mlp_params(key, branch_layers1)
    p2, key = init_mlp_params(key, branch_layers2)
    pt, key = init_mlp_params(key, trunk_layers)
    param_slab = pack_params([p1, p2, pt], layout, total_rows, slab_cols)  # one-time

    key, k1, k2, k3 = jax.random.split(key, 4)
    input_data1 = jax.random.normal(k1, (batch, npoints * 3), dtype=jnp.float32)
    input_data2 = jax.random.normal(k2, (batch, npoints), dtype=jnp.float32)
    spatial_coords = jax.random.normal(k3, (npoints, 3), dtype=jnp.float32)

    deeponet_forward = build_deeponet_forward(layout, total_rows, slab_cols, out_dim)
    out = deeponet_forward(input_data1, input_data2, spatial_coords, param_slab)
    out = jax.block_until_ready(out)

    ref = reference_forward(input_data1, input_data2, spatial_coords, p1, p2, pt)
    np.testing.assert_allclose(np.asarray(out), np.asarray(ref), rtol=1e-5, atol=1e-5)

    print("KERNEL_OK")
</pallas_src>

<mosaic_0001>
module attributes {stable_mosaic.version = 11 : i64} {
  func.func @kernel(%arg0: i32, %arg1: memref<16x48xf32, #tpu.memory_space<vmem>>, %arg2: memref<16x16xf32, #tpu.memory_space<vmem>>, %arg3: memref<16x3xf32, #tpu.memory_space<vmem>>, %arg4: memref<256x72xf32, #tpu.memory_space<vmem>>, %arg5: memref<16x4xf32, #tpu.memory_space<vmem>>) attributes {dimension_semantics = [#tpu.dimension_semantics<parallel>], iteration_bounds = array<i64: 1>, scalar_prefetch = 0 : i64, scratch_operands = 0 : i64, tpu.core_type = #tpu.core_type<tc>, window_params = [{transform_indices = @transform_0, window_bounds = array<i64: 16, 48>}, {transform_indices = @transform_1, window_bounds = array<i64: 16, 16>}, {transform_indices = @transform_2, window_bounds = array<i64: 16, 3>}, {pipeline_mode = #tpu.pipeline_mode<synchronous>, transform_indices = @transform_3, window_bounds = array<i64: 256, 72>}, {transform_indices = @transform_4, window_bounds = array<i64: 16, 4>}]} {
    %c0 = arith.constant 0 : index
    %c0_0 = arith.constant 0 : index
    %0 = vector.load %arg4[%c0, %c0_0] : memref<256x72xf32, #tpu.memory_space<vmem>>, vector<48x40xf32>
    %c48 = arith.constant 48 : index
    %c0_1 = arith.constant 0 : index
    %1 = vector.load %arg4[%c48, %c0_1] : memref<256x72xf32, #tpu.memory_space<vmem>>, vector<16x40xf32>
    %c64 = arith.constant 64 : index
    %c0_2 = arith.constant 0 : index
    %2 = vector.load %arg4[%c64, %c0_2] : memref<256x72xf32, #tpu.memory_space<vmem>>, vector<3x40xf32>
    %c72 = arith.constant 72 : index
    %c0_3 = arith.constant 0 : index
    %3 = vector.load %arg4[%c72, %c0_3] : memref<256x72xf32, #tpu.memory_space<vmem>>, vector<1x40xf32>
    %c0_4 = arith.constant 0 : index
    %c0_5 = arith.constant 0 : index
    %4 = vector.load %arg1[%c0_4, %c0_5] : memref<16x48xf32, #tpu.memory_space<vmem>>, vector<16x48xf32>
    %cst = arith.constant dense<0.000000e+00> : vector<16x40xf32>
    %5 = tpu.matmul %4, %0, %cst {dimension_numbers = #tpu.dot_dimension_numbers<[1], [0], [0], [1], [0, 0, 1, 1], [], []>} : vector<16x48xf32>, vector<48x40xf32>, vector<16x40xf32> -> vector<16x40xf32>
    %c0_6 = arith.constant 0 : index
    %c0_7 = arith.constant 0 : index
    %6 = vector.load %arg2[%c0_6, %c0_7] : memref<16x16xf32, #tpu.memory_space<vmem>>, vector<16x16xf32>
    %cst_8 = arith.constant dense<0.000000e+00> : vector<16x40xf32>
    %7 = tpu.matmul %6, %1, %cst_8 {dimension_numbers = #tpu.dot_dimension_numbers<[1], [0], [0], [1], [0, 0, 1, 1], [], []>} : vector<16x16xf32>, vector<16x40xf32>, vector<16x40xf32> -> vector<16x40xf32>
    %8 = arith.addf %5, %7 : vector<16x40xf32>
    %c0_9 = arith.constant 0 : index
    %c0_10 = arith.constant 0 : index
    %9 = vector.load %arg3[%c0_9, %c0_10] : memref<16x3xf32, #tpu.memory_space<vmem>>, vector<16x3xf32>
    %cst_11 = arith.constant dense<0.000000e+00> : vector<16x40xf32>
    %10 = tpu.matmul %9, %2, %cst_11 {dimension_numbers = #tpu.dot_dimension_numbers<[1], [0], [0], [1], [0, 0, 1, 1], [], []>} : vector<16x3xf32>, vector<3x40xf32>, vector<16x40xf32> -> vector<16x40xf32>
    %11 = arith.addf %8, %10 : vector<16x40xf32>
    %12 = vector.broadcast %3 : vector<1x40xf32> to vector<16x40xf32>
    %13 = arith.addf %11, %12 : vector<16x40xf32>
    %cst_12 = arith.constant 0.000000e+00 : f32
    %14 = vector.broadcast %cst_12 : f32 to vector<16x40xf32>
    %15 = arith.maximumf %13, %14 : vector<16x40xf32>
    %c80 = arith.constant 80 : index
    %c0_13 = arith.constant 0 : index
    %16 = vector.load %arg4[%c80, %c0_13] : memref<256x72xf32, #tpu.memory_space<vmem>>, vector<40x72xf32>
    %c120 = arith.constant 120 : index
    %c0_14 = arith.constant 0 : index
    %17 = vector.load %arg4[%c120, %c0_14] : memref<256x72xf32, #tpu.memory_space<vmem>>, vector<1x72xf32>
    %cst_15 = arith.constant dense<0.000000e+00> : vector<16x72xf32>
    %18 = tpu.matmul %15, %16, %cst_15 {dimension_numbers = #tpu.dot_dimension_numbers<[1], [0], [0], [1], [0, 0, 1, 1], [], []>} : vector<16x40xf32>, vector<40x72xf32>, vector<16x72xf32> -> vector<16x72xf32>
    %19 = vector.broadcast %17 : vector<1x72xf32> to vector<16x72xf32>
    %20 = arith.addf %18, %19 : vector<16x72xf32>
    %cst_16 = arith.constant 0.000000e+00 : f32
    %21 = vector.broadcast %cst_16 : f32 to vector<16x72xf32>
    %22 = arith.maximumf %20, %21 : vector<16x72xf32>
    %c128 = arith.constant 128 : index
    %c0_17 = arith.constant 0 : index
    %23 = vector.load %arg4[%c128, %c0_17] : memref<256x72xf32, #tpu.memory_space<vmem>>, vector<72x40xf32>
    %c200 = arith.constant 200 : index
    %c0_18 = arith.constant 0 : index
    %24 = vector.load %arg4[%c200, %c0_18] : memref<256x72xf32, #tpu.memory_space<vmem>>, vector<1x40xf32>
    %cst_19 = arith.constant dense<0.000000e+00> : vector<16x40xf32>
    %25 = tpu.matmul %22, %23, %cst_19 {dimension_numbers = #tpu.dot_dimension_numbers<[1], [0], [0], [1], [0, 0, 1, 1], [], []>} : vector<16x72xf32>, vector<72x40xf32>, vector<16x40xf32> -> vector<16x40xf32>
    %26 = vector.broadcast %24 : vector<1x40xf32> to vector<16x40xf32>
    %27 = arith.addf %25, %26 : vector<16x40xf32>
    %cst_20 = arith.constant 0.000000e+00 : f32
    %28 = vector.broadcast %cst_20 : f32 to vector<16x40xf32>
    %29 = arith.maximumf %27, %28 : vector<16x40xf32>
    %c208 = arith.constant 208 : index
    %c0_21 = arith.constant 0 : index
    %30 = vector.load %arg4[%c208, %c0_21] : memref<256x72xf32, #tpu.memory_space<vmem>>, vector<40x12xf32>
    %c248 = arith.constant 248 : index
    %c0_22 = arith.constant 0 : index
    %31 = vector.load %arg4[%c248, %c0_22] : memref<256x72xf32, #tpu.memory_space<vmem>>, vector<1x12xf32>
    %cst_23 = arith.constant dense<0.000000e+00> : vector<16x12xf32>
    %32 = tpu.matmul %29, %30, %cst_23 {dimension_numbers = #tpu.dot_dimension_numbers<[1], [0], [0], [1], [0, 0, 1, 1], [], []>} : vector<16x40xf32>, vector<40x12xf32>, vector<16x12xf32> -> vector<16x12xf32>
    %33 = vector.broadcast %31 : vector<1x12xf32> to vector<16x12xf32>
    %34 = arith.addf %32, %33 : vector<16x12xf32>
    %35 = vector.extract_strided_slice %34 {offsets = [0, 0], sizes = [16, 4], strides = [1, 1]} : vector<16x12xf32> to vector<16x4xf32>
    %36 = vector.extract_strided_slice %34 {offsets = [0, 4], sizes = [16, 4], strides = [1, 1]} : vector<16x12xf32> to vector<16x4xf32>
    %37 = vector.extract_strided_slice %34 {offsets = [0, 8], sizes = [16, 4], strides = [1, 1]} : vector<16x12xf32> to vector<16x4xf32>
    %38 = arith.addf %35, %36 : vector<16x4xf32>
    %39 = arith.mulf %38, %37 : vector<16x4xf32>
    %c0_24 = arith.constant 0 : index
    %c0_25 = arith.constant 0 : index
    %40 = vector.load %arg5[%c0_24, %c0_25] : memref<16x4xf32, #tpu.memory_space<vmem>>, vector<16x4xf32>
    tpu.vector_store %arg5[%c0_24, %c0_25], %39 {strides = array<i32>} : memref<16x4xf32, #tpu.memory_space<vmem>>, vector<16x4xf32>,
    return
  }
  func.func @transform_0(%arg0: i32) -> (i32, i32) {
    %c0_i32 = arith.constant 0 : i32
    %c0_i32_0 = arith.constant 0 : i32
    return %arg0, %c0_i32 : i32, i32
  }
  func.func @transform_1(%arg0: i32) -> (i32, i32) {
    %c0_i32 = arith.constant 0 : i32
    %c0_i32_0 = arith.constant 0 : i32
    return %arg0, %c0_i32 : i32, i32
  }
  func.func @transform_2(%arg0: i32) -> (i32, i32) {
    %c0_i32 = arith.constant 0 : i32
    %c0_i32_0 = arith.constant 0 : i32
    return %arg0, %c0_i32 : i32, i32
  }
  func.func @transform_3(%arg0: i32) -> (i32, i32) {
    %c0_i32 = arith.constant 0 : i32
    %c0_i32_0 = arith.constant 0 : i32
    %c0_i32_1 = arith.constant 0 : i32
    return %c0_i32, %c0_i32_0 : i32, i32
  }
  func.func @transform_4(%arg0: i32) -> (i32, i32) {
    %c0_i32 = arith.constant 0 : i32
    %c0_i32_0 = arith.constant 0 : i32
    return %arg0, %c0_i32 : i32, i32
  }
}

</mosaic_0001>

<llo_original>
// kernel: forward.1
$region0: #{forward.1}
  #allocation0 [shape = 'u32[]', space=smem, size = 0x4, offset = 0x4, fixed_abs, tag = 'smem constant byte address 0x4 - core index']
  #allocation1 [shape = 'u32[144,128]{1,0:T(1,128)}', space=vmem, size = 0x12000, scoped, tag = 'internal scratch']
  %s0 = inlined_call_operand.vmem [shape: f32[16,48], index: 0, kind: input, shape index: {}]
  %s1 = inlined_call_operand.vmem [shape: f32[16,16], index: 1, kind: input, shape index: {}]
  %s2 = inlined_call_operand.vmem [shape: f32[16,3], index: 2, kind: input, shape index: {}]
  %s3 = inlined_call_operand.vmem [shape: f32[256,72], index: 3, kind: input, shape index: {}]
  %s4 = inlined_call_operand.vmem [shape: f32[16,4], index: 4, kind: output, shape index: {}]
  %s5 = sld [smem:[#allocation0]]
  $region26: #{forward.1} parent=0
    _
  %s7 = ssub.s32 1, %s5
  %s8 = scalar_select 0, %s7, %s5
  // Predicated region
  $region2: #{forward.1} parent=0 // pred_check
    _
  $region3: #{forward.1} parent=0 // pred_check_branch
    %10 = sbr.rel (0) target = $region5
  $region4: #{forward.1} parent=0 // pred_region
    _
  $region5: #{forward.1} parent=0 // pred_fallthru
    _
  // Predicated region
  $region6: #{forward.1} parent=0 // pred_check
    _
  $region7: #{forward.1} parent=0 // pred_check_branch
    %12 = sbr.rel (0) target = $region9
  $region8: #{forward.1} parent=0 // pred_region
    _
  $region9: #{forward.1} parent=0 // pred_fallthru
    _
  // Predicated region
  $region10: #{forward.1} parent=0 // pred_check
    _
  $region11: #{forward.1} parent=0 // pred_check_branch
    %14 = sbr.rel (0) target = $region13
  $region12: #{forward.1} parent=0 // pred_region
    _
  $region13: #{forward.1} parent=0 // pred_fallthru
    _
  // Predicated region
  $region14: #{forward.1} parent=0 // pred_check
    _
  $region15: #{forward.1} parent=0 // pred_check_branch
    %16 = sbr.rel (0) target = $region17
  $region16: #{forward.1} parent=0 // pred_region
    _
  $region17: #{forward.1} parent=0 // pred_fallthru
    _
  %v17 = vld [vmem:[%s3] sm:$0xff]
  %v18 = vld [vmem:[%s3 + $0x8] sm:$0xff]
  %v19 = vld [vmem:[%s3 + $0x10] sm:$0xff]
  %v20 = vld [vmem:[%s3 + $0x18] sm:$0xff]
  %v21 = vld [vmem:[%s3 + $0x20] sm:$0xff]
  %v22 = vld [vmem:[%s3 + $0x28] sm:$0xff]
  %v23 = vld [vmem:[%s3 + $0x30] sm:$0xff]
  %v24 = vld [vmem:[%s3 + $0x38] sm:$0xff]
  %v25 = vld [vmem:[%s3 + $0x40] sm:$0x7]
  %v26 = vld [vmem:[%s3 + $0x48] sm:$0x1]
  %v27 = vld [vmem:[%s0] sm:$0xff]
  %v28 = vld [vmem:[%s0 + $0x8] sm:$0xff]
  %v29 = vld [vmem:[%s1] sm:$0xff]
  %v30 = vld [vmem:[%s1 + $0x8] sm:$0xff]
  %vm31 = vcmask 130048
  %v33 = vsel %vm31, %v29, 0
  %v36 = vsel %vm31, %v30, 0
  %38 = vmatprep.subr.mxu0 0.0
  %39 = vmatpush1.msra.mxu0 %v23
  %40 = vmatprep.subr.mxu0 0.0
  %41 = vmatpush1.msra.mxu0 %v24
  %42 = vmatprep.subr.mxu0 0.0
  %43 = vmatpush1.msra.mxu0 0.0
  %44 = vmatprep.subr.mxu0 0.0
  %45 = vmatpush1.msra.mxu0 0.0
  %46 = vmatprep.subr.mxu0 0.0
  %47 = vmatpush1.msra.mxu0 0.0
  %48 = vmatprep.subr.mxu0 0.0
  %49 = vmatpush1.msra.mxu0 0.0
  %50 = vmatprep.subr.mxu0 0.0
  %51 = vmatpush1.msra.mxu0 0.0
  %52 = vmatprep.subr.mxu0 0.0
  %53 = vmatpush1.msra.mxu0 0.0
  %54 = vmatprep.subr.mxu0 0.0
  %55 = vmatpush1.msra.mxu0 0.0
  %56 = vmatprep.subr.mxu0 0.0
  %57 = vmatpush1.msra.mxu0 0.0
  %58 = vmatprep.subr.mxu0 0.0
  %59 = vmatpush1.msra.mxu0 0.0
  %60 = vmatprep.subr.mxu0 0.0
  %61 = vmatpush1.msra.mxu0 0.0
  %62 = vmatprep.subr.mxu0 0.0
  %63 = vmatpush1.msra.mxu0 0.0
  %64 = vmatprep.subr.mxu0 0.0
  %65 = vmatpush1.msra.mxu0 0.0
  %66 = vmatprep.subr.mxu0 0.0
  %67 = vmatpush1.msra.mxu0 0.0
  %68 = vmatprep.subr.mxu0 0.0
  %69 = vmatpush1.msra.mxu0 0.0
  %70 = vmatprep.subr.mxu0 0.0
  %71 = vmatpush1.msra.mxu0 0.0
  %72 = vmatprep.subr.mxu0 0.0
  %73 = vmatpush1.msra.mxu0 0.0
  %74 = vmatprep.subr.mxu0 0.0
  %75 = vmatpush1.msra.mxu0 0.0
  %76 = vmatprep.subr.mxu0 0.0
  %77 = vmatpush1.msra.mxu0 0.0
  %78 = vmatprep.subr.mxu0 0.0
  %79 = vmatpush1.msra.mxu0 0.0
  %80 = vmatprep.subr.mxu0 0.0
  %81 = vmatpush1.msra.mxu0 0.0
  %82 = vmatprep.subr.mxu0 0.0
  %83 = vmatpush1.msra.mxu0 0.0
  %84 = vmatprep.subr.mxu0 0.0
  %85 = vmatpush1.msra.mxu0 0.0
  %86 = vmatprep.subr.mxu0 0.0
  %87 = vmatpush1.msra.mxu0 0.0
  %88 = vmatprep.subr.mxu0 0.0
  %89 = vmatpush1.msra.mxu0 0.0
  %90 = vmatprep.subr.mxu0 0.0
  %91 = vmatpush1.msra.mxu0 0.0
  %92 = vmatprep.subr.mxu0 0.0
  %93 = vmatpush1.msra.mxu0 0.0
  %94 = vmatprep.subr.mxu0 0.0
  %95 = vmatpush1.msra.mxu0 0.0
  %96 = vmatprep.subr.mxu0 0.0
  %97 = vmatpush1.msra.mxu0 0.0
  %98 = vmatprep.subr.mxu0 0.0
  %99 = vmatpush1.msra.mxu0 0.0
  %100 = vmatprep.subr.mxu0 0.0
  %101 = vmatpush1.msra.mxu0 0.0
  %102 = vmatprep.mubr.f32.mxu0 0.0
  %103 = vmatmul.mubr.f32.gmra.mrb[0].mxu0 %v33
  %v104 = vpop.f32.mrb[0].mxu0
  %v105 = vadd.f32 0.0, %v104
  %v106 = vpop.f32.mrb[0].mxu0
  %107 = vmatprep.mubr.f32.mxu0 0.0
  %108 = vmatmul.mubr.f32.gmra.mrb[0].mxu0 %v36
  %v109 = vpop.f32.mrb[0].mxu0
  %v110 = vadd.f32 0.0, %v109
  %v111 = vpop.f32.mrb[0].mxu0
  %112 = vdwg.mxu0
  %vm113 = vcmask 392192
  %v115 = vsel %vm113, %v27, 0
  %v118 = vsel %vm113, %v28, 0
  %120 = vmatprep.subr.mxu0 0.0
  %121 = vmatpush1.msra.mxu0 %v17
  %122 = vmatprep.subr.mxu0 0.0
  %123 = vmatpush1.msra.mxu0 %v18
  %124 = vmatprep.subr.mxu0 0.0
  %125 = vmatpush1.msra.mxu0 %v19
  %126 = vmatprep.subr.mxu0 0.0
  %127 = vmatpush1.msra.mxu0 %v20
  %128 = vmatprep.subr.mxu0 0.0
  %129 = vmatpush1.msra.mxu0 %v21
  %130 = vmatprep.subr.mxu0 0.0
  %131 = vmatpush1.msra.mxu0 %v22
  %132 = vmatprep.subr.mxu0 0.0
  %133 = vmatpush1.msra.mxu0 0.0
  %134 = vmatprep.subr.mxu0 0.0
  %135 = vmatpush1.msra.mxu0 0.0
  %136 = vmatprep.subr.mxu0 0.0
  %137 = vmatpush1.msra.mxu0 0.0
  %138 = vmatprep.subr.mxu0 0.0
  %139 = vmatpush1.msra.mxu0 0.0
  %140 = vmatprep.subr.mxu0 0.0
  %141 = vmatpush1.msra.mxu0 0.0
  %142 = vmatprep.subr.mxu0 0.0
  %143 = vmatpush1.msra.mxu0 0.0
  %144 = vmatprep.subr.mxu0 0.0
  %145 = vmatpush1.msra.mxu0 0.0
  %146 = vmatprep.subr.mxu0 0.0
  %147 = vmatpush1.msra.mxu0 0.0
  %148 = vmatprep.subr.mxu0 0.0
  %149 = vmatpush1.msra.mxu0 0.0
  %150 = vmatprep.subr.mxu0 0.0
  %151 = vmatpush1.msra.mxu0 0.0
  %152 = vmatprep.subr.mxu0 0.0
  %153 = vmatpush1.msra.mxu0 0.0
  %154 = vmatprep.subr.mxu0 0.0
  %155 = vmatpush1.msra.mxu0 0.0
  %156 = vmatprep.subr.mxu0 0.0
  %157 = vmatpush1.msra.mxu0 0.0
  %158 = vmatprep.subr.mxu0 0.0
  %159 = vmatpush1.msra.mxu0 0.0
  %160 = vmatprep.subr.mxu0 0.0
  %161 = vmatpush1.msra.mxu0 0.0
  %162 = vmatprep.subr.mxu0 0.0
  %163 = vmatpush1.msra.mxu0 0.0
  %164 = vmatprep.subr.mxu0 0.0
  %165 = vmatpush1.msra.mxu0 0.0
  %166 = vmatprep.subr.mxu0 0.0
  %167 = vmatpush1.msra.mxu0 0.0
  %168 = vmatprep.subr.mxu0 0.0
  %169 = vmatpush1.msra.mxu0 0.0
  %170 = vmatprep.subr.mxu0 0.0
  %171 = vmatpush1.msra.mxu0 0.0
  %172 = vmatprep.subr.mxu0 0.0
  %173 = vmatpush1.msra.mxu0 0.0
  %174 = vmatprep.subr.mxu0 0.0
  %175 = vmatpush1.msra.mxu0 0.0
  %176 = vmatprep.subr.mxu0 0.0
  %177 = vmatpush1.msra.mxu0 0.0
  %178 = vmatprep.subr.mxu0 0.0
  %179 = vmatpush1.msra.mxu0 0.0
  %180 = vmatprep.subr.mxu0 0.0
  %181 = vmatpush1.msra.mxu0 0.0
  %182 = vmatprep.subr.mxu0 0.0
  %183 = vmatpush1.msra.mxu0 0.0
  %184 = vmatprep.mubr.f32.mxu0 0.0
  %185 = vmatmul.mubr.f32.gmra.mrb[0].mxu0 %v115
  %v186 = vpop.f32.mrb[0].mxu0
  %v187 = vadd.f32 %v105, %v186
  %v188 = vpop.f32.mrb[0].mxu0
  %189 = vmatprep.mubr.f32.mxu0 0.0
  %190 = vmatmul.mubr.f32.gmra.mrb[0].mxu0 %v118
  %v191 = vpop.f32.mrb[0].mxu0
  %v192 = vadd.f32 %v110, %v191
  %v193 = vpop.f32.mrb[0].mxu0
  %194 = vdwg.mxu0
  %v195 = vld [vmem:[%s2] sm:$0xff]
  %v196 = vld [vmem:[%s2 + $0x8] sm:$0xff]
  %vm197 = vcmask 23552
  %v199 = vsel %vm197, %v195, 0
  %v202 = vsel %vm197, %v196, 0
  %vm204 = vcmask 1042432
  %v206 = vsel %vm204, %v25, 0
  %208 = vmatprep.subr.mxu0 0.0
  %209 = vmatpush1.msra.mxu0 %v206
  %210 = vmatprep.subr.mxu0 0.0
  %211 = vmatpush1.msra.mxu0 0.0
  %212 = vmatprep.subr.mxu0 0.0
  %213 = vmatpush1.msra.mxu0 0.0
  %214 = vmatprep.subr.mxu0 0.0
  %215 = vmatpush1.msra.mxu0 0.0
  %216 = vmatprep.subr.mxu0 0.0
  %217 = vmatpush1.msra.mxu0 0.0
  %218 = vmatprep.subr.mxu0 0.0
  %219 = vmatpush1.msra.mxu0 0.0
  %220 = vmatprep.subr.mxu0 0.0
  %221 = vmatpush1.msra.mxu0 0.0
  %222 = vmatprep.subr.mxu0 0.0
  %223 = vmatpush1.msra.mxu0 0.0
  %224 = vmatprep.subr.mxu0 0.0
  %225 = vmatpush1.msra.mxu0 0.0
  %226 = vmatprep.subr.mxu0 0.0
  %227 = vmatpush1.msra.mxu0 0.0
  %228 = vmatprep.subr.mxu0 0.0
  %229 = vmatpush1.msra.mxu0 0.0
  %230 = vmatprep.subr.mxu0 0.0
  %231 = vmatpush1.msra.mxu0 0.0
  %232 = vmatprep.subr.mxu0 0.0
  %233 = vmatpush1.msra.mxu0 0.0
  %234 = vmatprep.subr.mxu0 0.0
  %235 = vmatpush1.msra.mxu0 0.0
  %236 = vmatprep.subr.mxu0 0.0
  %237 = vmatpush1.msra.mxu0 0.0
  %238 = vmatprep.subr.mxu0 0.0
  %239 = vmatpush1.msra.mxu0 0.0
  %240 = vmatprep.subr.mxu0 0.0
  %241 = vmatpush1.msra.mxu0 0.0
  %242 = vmatprep.subr.mxu0 0.0
  %243 = vmatpush1.msra.mxu0 0.0
  %244 = vmatprep.subr.mxu0 0.0
  %245 = vmatpush1.msra.mxu0 0.0
  %246 = vmatprep.subr.mxu0 0.0
  %247 = vmatpush1.msra.mxu0 0.0
  %248 = vmatprep.subr.mxu0 0.0
  %249 = vmatpush1.msra.mxu0 0.0
  %250 = vmatprep.subr.mxu0 0.0
  %251 = vmatpush1.msra.mxu0 0.0
  %252 = vmatprep.subr.mxu0 0.0
  %253 = vmatpush1.msra.mxu0 0.0
  %254 = vmatprep.subr.mxu0 0.0
  %255 = vmatpush1.msra.mxu0 0.0
  %256 = vmatprep.subr.mxu0 0.0
  %257 = vmatpush1.msra.mxu0 0.0
  %258 = vmatprep.subr.mxu0 0.0
  %259 = vmatpush1.msra.mxu0 0.0
  %260 = vmatprep.subr.mxu0 0.0
  %261 = vmatpush1.msra.mxu0 0.0
  %262 = vmatprep.subr.mxu0 0.0
  %263 = vmatpush1.msra.mxu0 0.0
  %264 = vmatprep.subr.mxu0 0.0
  %265 = vmatpush1.msra.mxu0 0.0
  %266 = vmatprep.subr.mxu0 0.0
  %267 = vmatpush1.msra.mxu0 0.0
  %268 = vmatprep.subr.mxu0 0.0
  %269 = vmatpush1.msra.mxu0 0.0
  %270 = vmatprep.subr.mxu0 0.0
  %271 = vmatpush1.msra.mxu0 0.0
  %272 = vmatprep.mubr.f32.mxu0 0.0
  %273 = vmatmul.mubr.f32.gmra.mrb[0].mxu0 %v199
  %v274 = vpop.f32.mrb[0].mxu0
  %v275 = vadd.f32 0.0, %v274
  %v276 = vpop.f32.mrb[0].mxu0
  %277 = vmatprep.mubr.f32.mxu0 0.0
  %278 = vmatmul.mubr.f32.gmra.mrb[0].mxu0 %v202
  %v279 = vpop.f32.mrb[0].mxu0
  %v280 = vadd.f32 0.0, %v279
  %v281 = vpop.f32.mrb[0].mxu0
  %282 = vdwg.mxu0
  %v283 = vadd.f32 %v187, %v275
  %v284 = vadd.f32 %v192, %v280
  %v285 = vlaneseq
  %v286 = vshrl.u32 %v285, 7
  %v287 = vsub.s32 0, %v286
  %v288 = vrot.slane %v26, %v287
  %v289 = vadd.f32 %v283, %v288
  %v290 = vadd.f32 %v284, %v288
  %v291 = vmax.f32 %v289, 0.0
  %v292 = vmax.f32 %v290, 0.0
  %v293 = vld [vmem:[%s3 + $0x50] sm:$0xff]
  %v294 = vld [vmem:[%s3 + $0x58] sm:$0xff]
  %v295 = vld [vmem:[%s3 + $0x60] sm:$0xff]
  %v296 = vld [vmem:[%s3 + $0x68] sm:$0xff]
  %v297 = vld [vmem:[%s3 + $0x70] sm:$0xff]
  %v298 = vld [vmem:[%s3 + $0x78] sm:$0x1]
  %v299 = vlaneseq
  %v300 = vshrl.u32 %v299, 7
  %v301 = vsub.s32 0, %v300
  %v302 = vrot.slane %v298, %v301
  %vm303 = vcmask 326656
  %v305 = vsel %vm303, %v291, 0
  %v308 = vsel %vm303, %v292, 0
  %310 = vmatprep.subr.mxu0 0.0
  %311 = vmatpush1.msra.mxu0 %v293
  %312 = vmatprep.subr.mxu0 0.0
  %313 = vmatpush1.msra.mxu0 %v294
  %314 = vmatprep.subr.mxu0 0.0
  %315 = vmatpush1.msra.mxu0 %v295
  %316 = vmatprep.subr.mxu0 0.0
  %317 = vmatpush1.msra.mxu0 %v296
  %318 = vmatprep.subr.mxu0 0.0
  %319 = vmatpush1.msra.mxu0 %v297
  %320 = vmatprep.subr.mxu0 0.0
  %321 = vmatpush1.msra.mxu0 0.0
  %322 = vmatprep.subr.mxu0 0.0
  %323 = vmatpush1.msra.mxu0 0.0
  %324 = vmatprep.subr.mxu0 0.0
  %325 = vmatpush1.msra.mxu0 0.0
  %326 = vmatprep.subr.mxu0 0.0
  %327 = vmatpush1.msra.mxu0 0.0
  %328 = vmatprep.subr.mxu0 0.0
  %329 = vmatpush1.msra.mxu0 0.0
  %330 = vmatprep.subr.mxu0 0.0
  %331 = vmatpush1.msra.mxu0 0.0
  %332 = vmatprep.subr.mxu0 0.0
  %333 = vmatpush1.msra.mxu0 0.0
  %334 = vmatprep.subr.mxu0 0.0
  %335 = vmatpush1.msra.mxu0 0.0
  %336 = vmatprep.subr.mxu0 0.0
  %337 = vmatpush1.msra.mxu0 0.0
  %338 = vmatprep.subr.mxu0 0.0
  %339 = vmatpush1.msra.mxu0 0.0
  %340 = vmatprep.subr.mxu0 0.0
  %341 = vmatpush1.msra.mxu0 0.0
  %342 = vmatprep.subr.mxu0 0.0
  %343 = vmatpush1.msra.mxu0 0.0
  %344 = vmatprep.subr.mxu0 0.0
  %345 = vmatpush1.msra.mxu0 0.0
  %346 = vmatprep.subr.mxu0 0.0
  %347 = vmatpush1.msra.mxu0 0.0
  %348 = vmatprep.subr.mxu0 0.0
  %349 = vmatpush1.msra.mxu0 0.0
  %350 = vmatprep.subr.mxu0 0.0
  %351 = vmatpush1.msra.mxu0 0.0
  %352 = vmatprep.subr.mxu0 0.0
  %353 = vmatpush1.msra.mxu0 0.0
  %354 = vmatprep.subr.mxu0 0.0
  %355 = vmatpush1.msra.mxu0 0.0
  %356 = vmatprep.subr.mxu0 0.0
  %357 = vmatpush1.msra.mxu0 0.0
  %358 = vmatprep.subr.mxu0 0.0
  %359 = vmatpush1.msra.mxu0 0.0
  %360 = vmatprep.subr.mxu0 0.0
  %361 = vmatpush1.msra.mxu0 0.0
  %362 = vmatprep.subr.mxu0 0.0
  %363 = vmatpush1.msra.mxu0 0.0
  %364 = vmatprep.subr.mxu0 0.0
  %365 = vmatpush1.msra.mxu0 0.0
  %366 = vmatprep.subr.mxu0 0.0
  %367 = vmatpush1.msra.mxu0 0.0
  %368 = vmatprep.subr.mxu0 0.0
  %369 = vmatpush1.msra.mxu0 0.0
  %370 = vmatprep.subr.mxu0 0.0
  %371 = vmatpush1.msra.mxu0 0.0
  %372 = vmatprep.subr.mxu0 0.0
  %373 = vmatpush1.msra.mxu0 0.0
  %374 = vmatprep.mubr.f32.mxu0 0.0
  %375 = vmatmul.mubr.f32.gmra.mrb[0].mxu0 %v305
  %v376 = vpop.f32.mrb[0].mxu0
  %v377 = vadd.f32 %v302, %v376
  %v378 = vpop.f32.mrb[0].mxu0
  %379 = vmatprep.mubr.f32.mxu0 0.0
  %380 = vmatmul.mubr.f32.gmra.mrb[0].mxu0 %v308
  %v381 = vpop.f32.mrb[0].mxu0
  %v382 = vadd.f32 %v302, %v381
  %v383 = vpop.f32.mrb[0].mxu0
  %384 = vdwg.mxu0
  %v385 = vmax.f32 %v377, 0.0
  %v386 = vmax.f32 %v382, 0.0
  %v387 = vld [vmem:[%s3 + $0x80] sm:$0xff]
  %v388 = vld [vmem:[%s3 + $0x88] sm:$0xff]
  %v389 = vld [vmem:[%s3 + $0x90] sm:$0xff]
  %v390 = vld [vmem:[%s3 + $0x98] sm:$0xff]
  %v391 = vld [vmem:[%s3 + $0xa0] sm:$0xff]
  %v392 = vld [vmem:[%s3 + $0xa8] sm:$0xff]
  %v393 = vld [vmem:[%s3 + $0xb0] sm:$0xff]
  %v394 = vld [vmem:[%s3 + $0xb8] sm:$0xff]
  %v395 = vld [vmem:[%s3 + $0xc0] sm:$0xff]
  %v396 = vld [vmem:[%s3 + $0xc8] sm:$0x1]
  %v397 = vlaneseq
  %v398 = vshrl.u32 %v397, 7
  %v399 = vsub.s32 0, %v398
  %v400 = vrot.slane %v396, %v399
  %vm401 = vcmask 588800
  %v403 = vsel %vm401, %v385, 0
  %v406 = vsel %vm401, %v386, 0
  %408 = vmatprep.subr.mxu0 0.0
  %409 = vmatpush1.msra.mxu0 %v387
  %410 = vmatprep.subr.mxu0 0.0
  %411 = vmatpush1.msra.mxu0 %v388
  %412 = vmatprep.subr.mxu0 0.0
  %413 = vmatpush1.msra.mxu0 %v389
  %414 = vmatprep.subr.mxu0 0.0
  %415 = vmatpush1.msra.mxu0 %v390
  %416 = vmatprep.subr.mxu0 0.0
  %417 = vmatpush1.msra.mxu0 %v391
  %418 = vmatprep.subr.mxu0 0.0
  %419 = vmatpush1.msra.mxu0 %v392
  %420 = vmatprep.subr.mxu0 0.0
  %421 = vmatpush1.msra.mxu0 %v393
  %422 = vmatprep.subr.mxu0 0.0
  %423 = vmatpush1.msra.mxu0 %v394
  %424 = vmatprep.subr.mxu0 0.0
  %425 = vmatpush1.msra.mxu0 %v395
  %426 = vmatprep.subr.mxu0 0.0
  %427 = vmatpush1.msra.mxu0 0.0
  %428 = vmatprep.subr.mxu0 0.0
  %429 = vmatpush1.msra.mxu0 0.0
  %430 = vmatprep.subr.mxu0 0.0
  %431 = vmatpush1.msra.mxu0 0.0
  %432 = vmatprep.subr.mxu0 0.0
  %433 = vmatpush1.msra.mxu0 0.0
  %434 = vmatprep.subr.mxu0 0.0
  %435 = vmatpush1.msra.mxu0 0.0
  %436 = vmatprep.subr.mxu0 0.0
  %437 = vmatpush1.msra.mxu0 0.0
  %438 = vmatprep.subr.mxu0 0.0
  %439 = vmatpush1.msra.mxu0 0.0
  %440 = vmatprep.subr.mxu0 0.0
  %441 = vmatpush1.msra.mxu0 0.0
  %442 = vmatprep.subr.mxu0 0.0
  %443 = vmatpush1.msra.mxu0 0.0
  %444 = vmatprep.subr.mxu0 0.0
  %445 = vmatpush1.msra.mxu0 0.0
  %446 = vmatprep.subr.mxu0 0.0
  %447 = vmatpush1.msra.mxu0 0.0
  %448 = vmatprep.subr.mxu0 0.0
  %449 = vmatpush1.msra.mxu0 0.0
  %450 = vmatprep.subr.mxu0 0.0
  %451 = vmatpush1.msra.mxu0 0.0
  %452 = vmatprep.subr.mxu0 0.0
  %453 = vmatpush1.msra.mxu0 0.0
  %454 = vmatprep.subr.mxu0 0.0
  %455 = vmatpush1.msra.mxu0 0.0
  %456 = vmatprep.subr.mxu0 0.0
  %457 = vmatpush1.msra.mxu0 0.0
  %458 = vmatprep.subr.mxu0 0.0
  %459 = vmatpush1.msra.mxu0 0.0
  %460 = vmatprep.subr.mxu0 0.0
  %461 = vmatpush1.msra.mxu0 0.0
  %462 = vmatprep.subr.mxu0 0.0
  %463 = vmatpush1.msra.mxu0 0.0
  %464 = vmatprep.subr.mxu0 0.0
  %465 = vmatpush1.msra.mxu0 0.0
  %466 = vmatprep.subr.mxu0 0.0
  %467 = vmatpush1.msra.mxu0 0.0
  %468 = vmatprep.subr.mxu0 0.0
  %469 = vmatpush1.msra.mxu0 0.0
  %470 = vmatprep.subr.mxu0 0.0
  %471 = vmatpush1.msra.mxu0 0.0
  %472 = vmatprep.mubr.f32.mxu0 0.0
  %473 = vmatmul.mubr.f32.gmra.mrb[0].mxu0 %v403
  %v474 = vpop.f32.mrb[0].mxu0
  %v475 = vadd.f32 %v400, %v474
  %v476 = vpop.f32.mrb[0].mxu0
  %477 = vmatprep.mubr.f32.mxu0 0.0
  %478 = vmatmul.mubr.f32.gmra.mrb[0].mxu0 %v406
  %v479 = vpop.f32.mrb[0].mxu0
  %v480 = vadd.f32 %v400, %v479
  %v481 = vpop.f32.mrb[0].mxu0
  %482 = vdwg.mxu0
  %v483 = vmax.f32 %v475, 0.0
  %v484 = vmax.f32 %v480, 0.0
  %v485 = vld [vmem:[%s3 + $0xd0] sm:$0xff]
  %v486 = vld [vmem:[%s3 + $0xd8] sm:$0xff]
  %v487 = vld [vmem:[%s3 + $0xe0] sm:$0xff]
  %v488 = vld [vmem:[%s3 + $0xe8] sm:$0xff]
  %v489 = vld [vmem:[%s3 + $0xf0] sm:$0xff]
  %v490 = vld [vmem:[%s3 + $0xf8] sm:$0x1]
  %v491 = vlaneseq
  %v492 = vshrl.u32 %v491, 7
  %v493 = vsub.s32 0, %v492
  %v494 = vrot.slane %v490, %v493
  %v496 = vsel %vm303, %v483, 0
  %v499 = vsel %vm303, %v484, 0
  %501 = vmatprep.subr.mxu0 0.0
  %502 = vmatpush1.msra.mxu0 %v485
  %503 = vmatprep.subr.mxu0 0.0
  %504 = vmatpush1.msra.mxu0 %v486
  %505 = vmatprep.subr.mxu0 0.0
  %506 = vmatpush1.msra.mxu0 %v487
  %507 = vmatprep.subr.mxu0 0.0
  %508 = vmatpush1.msra.mxu0 %v488
  %509 = vmatprep.subr.mxu0 0.0
  %510 = vmatpush1.msra.mxu0 %v489
  %511 = vmatprep.subr.mxu0 0.0
  %512 = vmatpush1.msra.mxu0 0.0
  %513 = vmatprep.subr.mxu0 0.0
  %514 = vmatpush1.msra.mxu0 0.0
  %515 = vmatprep.subr.mxu0 0.0
  %516 = vmatpush1.msra.mxu0 0.0
  %517 = vmatprep.subr.mxu0 0.0
  %518 = vmatpush1.msra.mxu0 0.0
  %519 = vmatprep.subr.mxu0 0.0
  %520 = vmatpush1.msra.mxu0 0.0
  %521 = vmatprep.subr.mxu0 0.0
  %522 = vmatpush1.msra.mxu0 0.0
  %523 = vmatprep.subr.mxu0 0.0
  %524 = vmatpush1.msra.mxu0 0.0
  %525 = vmatprep.subr.mxu0 0.0
  %526 = vmatpush1.msra.mxu0 0.0
  %527 = vmatprep.subr.mxu0 0.0
  %528 = vmatpush1.msra.mxu0 0.0
  %529 = vmatprep.subr.mxu0 0.0
  %530 = vmatpush1.msra.mxu0 0.0
  %531 = vmatprep.subr.mxu0 0.0
  %532 = vmatpush1.msra.mxu0 0.0
  %533 = vmatprep.subr.mxu0 0.0
  %534 = vmatpush1.msra.mxu0 0.0
  %535 = vmatprep.subr.mxu0 0.0
  %536 = vmatpush1.msra.mxu0 0.0
  %537 = vmatprep.subr.mxu0 0.0
  %538 = vmatpush1.msra.mxu0 0.0
  %539 = vmatprep.subr.mxu0 0.0
  %540 = vmatpush1.msra.mxu0 0.0
  %541 = vmatprep.subr.mxu0 0.0
  %542 = vmatpush1.msra.mxu0 0.0
  %543 = vmatprep.subr.mxu0 0.0
  %544 = vmatpush1.msra.mxu0 0.0
  %545 = vmatprep.subr.mxu0 0.0
  %546 = vmatpush1.msra.mxu0 0.0
  %547 = vmatprep.subr.mxu0 0.0
  %548 = vmatpush1.msra.mxu0 0.0
  %549 = vmatprep.subr.mxu0 0.0
  %550 = vmatpush1.msra.mxu0 0.0
  %551 = vmatprep.subr.mxu0 0.0
  %552 = vmatpush1.msra.mxu0 0.0
  %553 = vmatprep.subr.mxu0 0.0
  %554 = vmatpush1.msra.mxu0 0.0
  %555 = vmatprep.subr.mxu0 0.0
  %556 = vmatpush1.msra.mxu0 0.0
  %557 = vmatprep.subr.mxu0 0.0
  %558 = vmatpush1.msra.mxu0 0.0
  %559 = vmatprep.subr.mxu0 0.0
  %560 = vmatpush1.msra.mxu0 0.0
  %561 = vmatprep.subr.mxu0 0.0
  %562 = vmatpush1.msra.mxu0 0.0
  %563 = vmatprep.subr.mxu0 0.0
  %564 = vmatpush1.msra.mxu0 0.0
  %565 = vmatprep.mubr.f32.mxu0 0.0
  %566 = vmatmul.mubr.f32.gmra.mrb[0].mxu0 %v496
  %v567 = vpop.f32.mrb[0].mxu0
  %v568 = vadd.f32 %v494, %v567
  %v569 = vpop.f32.mrb[0].mxu0
  %570 = vmatprep.mubr.f32.mxu0 0.0
  %571 = vmatmul.mubr.f32.gmra.mrb[0].mxu0 %v499
  %v572 = vpop.f32.mrb[0].mxu0
  %v573 = vadd.f32 %v494, %v572
  %v574 = vpop.f32.mrb[0].mxu0
  %575 = vdwg.mxu0
  %578 = vrot.lane.b32.xlu0 %v568, 124
  %v579 = vpop.permute.xlu0 %578
  %580 = vrot.lane.b32.xlu0 %v573, 124
  %v581 = vpop.permute.xlu0 %580
  %v584 = vadd.f32 %v568, %v579
  %v585 = vadd.f32 %v573, %v581
  %586 = vrot.lane.b32.xlu0 %v568, 120
  %v587 = vpop.permute.xlu0 %586
  %588 = vrot.lane.b32.xlu0 %v573, 120
  %v589 = vpop.permute.xlu0 %588
  %v592 = vmul.f32 %v584, %v587
  %v593 = vmul.f32 %v585, %v589
  %vm594 = vcmask 31744
  %595 = vst.msk [vmem:[%s4] sm:$0xff] %vm594, %v592
  %596 = vst.msk [vmem:[%s4 + $0x8] sm:$0xff] %vm594, %v593
  // Predicated region
  $region18: #{forward.1} parent=0 // pred_check
    _
  $region19: #{forward.1} parent=0 // pred_check_branch
    %598 = sbr.rel (0) target = $region21
  $region20: #{forward.1} parent=0 // pred_region
    _
  $region21: #{forward.1} parent=0 // pred_fallthru
    _
  // Predicated region
  $region22: #{forward.1} parent=0 // pred_check
    _
  $region23: #{forward.1} parent=0 // pred_check_branch
    %600 = sbr.rel (0) target = $region25
  $region24: #{forward.1} parent=0 // pred_region
    _
  $region25: #{forward.1} parent=0 // pred_fallthru
    _

</llo_original>
